<compile_context>
chip_gen: v6e
topology: v6e:2x2x1
jax: 0.10.0
libtpu: 0.0.40
codegen_flags: <defaults>
</compile_context>

<pallas_src>
import functools

import jax
import jax.numpy as jnp
from jax.experimental import pallas as pl
from jax.experimental.pallas import tpu as pltpu

# TODO(synk): the MCTS tree search itself (MCTSNode dict tree, select/expand/
# backpropagate, env.step_logic, Categorical sampling in best_child) is
# host-side control flow over an external env and cannot be expressed as a
# Pallas kernel.  We implement the `action is not None` path of forward().
# For real MCTS workloads, batch many node evaluations into one call so the
# row count N is large; the kernel below is tiled over N for that.


def _round_up(x, m):
    return ((x + m - 1) // m) * m


def _model_kernel(x_ref, mask_ref, act_ref, w1_ref, b1_ref, wh_ref, bh_ref,
                  out_ref, *, num_actions):
    """Fused actor-critic forward for one tile of rows.

    x_ref    : [T, D]    bf16  flattened (batch*agents) observation rows
    mask_ref : [T, K]    bf16  action mask (0/1)
    act_ref  : [T, 1]    int32 chosen action ids
    w1_ref   : [D, H]    bf16  hidden weight
    b1_ref   : [1, H]    f32   hidden bias
    wh_ref   : [H, K+1]  bf16  fused policy(0..K-1)+value(K) head weight
    bh_ref   : [1, K+1]  f32   fused head bias
    out_ref  : [T, L]    f32   cols 0..K-1 probs, K logp, K+1 entropy,
                               K+2 value; cols >= K+3 unwritten (never read)
    """
    K = num_actions
    T = x_ref.shape[0]

    # hidden layer: bf16 MXU matmul with f32 accumulate, VPU bias add + relu
    h = jnp.dot(x_ref[...], w1_ref[...], preferred_element_type=jnp.float32)
    h = jnp.maximum(h + b1_ref[...], 0.0)                        # [T, H] f32

    # fused policy + value heads: one bf16 MXU matmul
    heads = jnp.dot(h.astype(jnp.bfloat16), wh_ref[...],
                    preferred_element_type=jnp.float32) + bh_ref[...]   # [T, K+1]
    logits = heads[:, :K]                                        # [T, K]
    value = heads[:, K:K + 1]                                    # [T, 1]

    valid = mask_ref[...] > 0                                    # [T, K] bool
    act = act_ref[...]                                           # [T, 1] int32

    # masked, numerically stable log-softmax (all f32); invalid lanes -> -1e9
    masked_logits = jnp.where(valid, logits, -1e9)
    row_max = jnp.max(masked_logits, axis=-1, keepdims=True)     # [T, 1]
    e = jnp.exp(masked_logits - row_max)
    denom = jnp.sum(e, axis=-1, keepdims=True)                   # >= 1 always
    log_z = row_max + jnp.log(denom)
    log_probs_all = masked_logits - log_z                        # [T, K]
    probs = jnp.exp(log_probs_all)                               # EUP; invalid lanes underflow to 0

    # gather log prob at the chosen action via one-hot lane compare
    col = jax.lax.broadcasted_iota(jnp.int32, (T, K), 1)
    onehot = (col == act).astype(jnp.float32)
    log_prob = jnp.sum(onehot * log_probs_all, axis=-1, keepdims=True)

    # entropy over valid actions
    entropy = -jnp.sum(jnp.where(valid, probs * log_probs_all, 0.0),
                       axis=-1, keepdims=True)

    # narrow output slab: one store for probs, one merged [T,3] store for the
    # three scalar stats; tail columns (>= K+3) intentionally left unwritten.
    out_ref[:, :K] = probs
    out_ref[:, K:K + 3] = jnp.concatenate([log_prob, entropy, value], axis=-1)


def prepare_params(params):
    """One-time parameter prep (hoisted out of the per-call hot path):
    fuse the policy+value heads into a single slab and cast weights to bf16."""
    w1, b1, wpi, bpi, wv, bv = params
    H = w1.shape[1]
    K = wpi.shape[1]
    w1_bf = w1.astype(jnp.bfloat16)                                      # [D, H]
    b1_f = b1.reshape(1, H).astype(jnp.float32)                          # [1, H]
    wh_bf = jnp.concatenate([wpi, wv], axis=1).astype(jnp.bfloat16)      # [H, K+1]
    bh_f = jnp.concatenate([bpi, bv], axis=1).reshape(1, K + 1).astype(jnp.float32)
    return (w1_bf, b1_f, wh_bf, bh_f)


def _choose_tile(n_rows, max_tile_rows):
    """Row tile: as big as possible (HBM/overhead-bound kernel), multiple of
    128, and >=2 grid steps whenever N allows so the parallel axis can shard
    across v7x's two TensorCores."""
    n128 = _round_up(max(n_rows, 1), 128)
    if n128 <= 128:
        return 128
    return min(max_tile_rows, max(128, ((n128 // 2) // 128) * 128))


@functools.partial(jax.jit, static_argnames=("max_tile_rows",))
def mcts_forward(state, mask, action, fused_params, *, max_tile_rows=1024):
    """Equivalent of MCTS.forward(state, mask, action) with `action` provided.

    state:  [B, A, D] float32
    mask:   [B, A, K] (bool or 0/1)
    action: [B, A]    int32
    fused_params: output of prepare_params()
    returns (action, log_prob, entropy, value, probs)
    """
    B, A, D = state.shape
    K = mask.shape[-1]
    N = B * A
    w1_bf, b1_f, wh_bf, bh_f = fused_params
    H = w1_bf.shape[1]

    # Activations passed as-is (bf16 matmul operands, int32 action ids);
    # no per-call packing concats.
    x = state.reshape(N, D).astype(jnp.bfloat16)
    m = mask.reshape(N, K).astype(jnp.bfloat16)
    a = action.reshape(N, 1).astype(jnp.int32)

    tile_n = _choose_tile(N, max_tile_rows)
    n_pad = _round_up(N, tile_n)
    if n_pad != N:
        # Only the remainder tile needs padding; callers with large N should
        # prefer batch sizes that are multiples of tile_n to avoid this copy.
        pad = n_pad - N
        x = jnp.pad(x, ((0, pad), (0, 0)))
        m = jnp.pad(m, ((0, pad), (0, 0)))
        a = jnp.pad(a, ((0, pad), (0, 0)))

    # Narrow output slab (last block dim == full array dim, so legal for any L).
    L = _round_up(K + 3, 8)

    # Explicit VMEM budget (lane dims pad to 128 in VMEM), capped well under
    # v7x's 64 MiB physical; also covers v5e's 16 MiB default scoped VMEM.
    lane = lambda n: _round_up(n, 128)
    act_bytes_per_row = lane(D) * 2 + lane(K) * 2 + lane(1) * 4 + lane(L) * 4
    weight_bytes = (lane(H) * _round_up(D, 16) * 2 + lane(H) * 8 * 4
                    + lane(K + 1) * _round_up(H, 16) * 2 + lane(K + 1) * 8 * 4)
    vmem_est = 2 * tile_n * act_bytes_per_row + 2 * weight_bytes
    vmem_limit = int(min(48 << 20, max(8 << 20, 4 * vmem_est)))

    out = pl.pallas_call(
        functools.partial(_model_kernel, num_actions=K),
        out_shape=jax.ShapeDtypeStruct((n_pad, L), jnp.float32),
        grid=(n_pad // tile_n,),
        in_specs=[
            pl.BlockSpec((tile_n, D), lambda i: (i, 0)),      # x (bf16)
            pl.BlockSpec((tile_n, K), lambda i: (i, 0)),      # mask (bf16)
            pl.BlockSpec((tile_n, 1), lambda i: (i, 0)),      # action (int32)
            pl.BlockSpec((D, H), lambda i: (0, 0)),           # weights stay VMEM-resident
            pl.BlockSpec((1, H), lambda i: (0, 0)),
            pl.BlockSpec((H, K + 1), lambda i: (0, 0)),
            pl.BlockSpec((1, K + 1), lambda i: (0, 0)),
        ],
        out_specs=pl.BlockSpec((tile_n, L), lambda i: (i, 0)),
        compiler_params=pltpu.CompilerParams(
            dimension_semantics=("parallel",),   # shard row tiles across TCs (v7x)
            vmem_limit_bytes=vmem_limit),
    )(x, m, a, w1_bf, b1_f, wh_bf, bh_f)

    probs = out[:N, :K].reshape(B, A, K)
    log_prob = out[:N, K].reshape(B, A)
    entropy = out[:N, K + 1].reshape(B, A)
    value = out[:N, K + 2].reshape(B, A)
    return action, log_prob, entropy, value, probs


def init_params(key, obs_dim, hidden, num_actions):
    k1, k2, k3 = jax.random.split(key, 3)
    w1 = jax.random.normal(k1, (obs_dim, hidden), jnp.float32) * 0.1
    b1 = jnp.zeros((1, hidden), jnp.float32)
    wpi = jax.random.normal(k2, (hidden, num_actions), jnp.float32) * 0.1
    bpi = jnp.zeros((1, num_actions), jnp.float32)
    wv = jax.random.normal(k3, (hidden, 1), jnp.float32) * 0.1
    bv = jnp.zeros((1, 1), jnp.float32)
    return (w1, b1, wpi, bpi, wv, bv)


def _reference(state, mask, action, params):
    """Pure-JAX f32 reference of the fused model call (for sanity checking)."""
    w1, b1, wpi, bpi, wv, bv = params
    B, A, D = state.shape
    K = mask.shape[-1]
    x = state.reshape(-1, D)
    m = mask.reshape(-1, K)
    a = action.reshape(-1)
    h = jax.nn.relu(x @ w1 + b1)
    logits = jnp.where(m > 0, h @ wpi + bpi, -1e9)
    logp_all = jax.nn.log_softmax(logits, axis=-1)
    probs = jnp.where(m > 0, jnp.exp(logp_all), 0.0)
    logp = jnp.take_along_axis(logp_all, a[:, None], axis=-1)[:, 0]
    ent = -jnp.sum(jnp.where(m > 0, probs * logp_all, 0.0), axis=-1)
    val = (h @ wv + bv)[:, 0]
    return (logp.reshape(B, A), ent.reshape(B, A), val.reshape(B, A),
            probs.reshape(B, A, K))


if __name__ == "__main__":
    B, A, D, H, K = 2, 4, 32, 32, 8   # batch, agents, obs_dim, hidden, num_actions

    key = jax.random.PRNGKey(0)
    k_state, k_mask, k_act, k_params = jax.random.split(key, 4)

    state = jax.random.normal(k_state, (B, A, D), jnp.float32)
    mask = (jax.random.uniform(k_mask, (B, A, K)) > 0.3).astype(jnp.float32)
    # pick an action and force it to be valid (matches the assert in forward())
    action = jax.random.randint(k_act, (B, A), 0, K, jnp.int32)
    onehot = jax.nn.one_hot(action, K, dtype=jnp.float32)
    mask = jnp.maximum(mask, onehot)

    params = init_params(k_params, D, H, K)
    fused_params = prepare_params(params)   # one-time weight fusion / bf16 cast

    act_out, log_prob, entropy, value, probs = mcts_forward(
        state, mask, action, fused_params)
    jax.block_until_ready((act_out, log_prob, entropy, value, probs))

    # sanity: probabilities sum to 1 over valid actions, invalid actions have prob 0
    assert jnp.allclose(jnp.sum(probs, axis=-1), 1.0, atol=5e-4)
    assert bool(jnp.all(jnp.where(mask == 0.0, probs, 0.0) == 0.0))
    # the assertion from MCTS.forward: mask at chosen action must be 1
    assert bool(jnp.all(jnp.take_along_axis(mask, action[..., None], axis=-1) == 1.0))

    # compare against a pure-JAX f32 reference (loose tol: bf16 MXU path)
    r_logp, r_ent, r_val, r_probs = _reference(state, mask, action, params)
    assert jnp.allclose(log_prob, r_logp, atol=5e-2, rtol=5e-2)
    assert jnp.allclose(entropy, r_ent, atol=5e-2, rtol=5e-2)
    assert jnp.allclose(value, r_val, atol=5e-2, rtol=5e-2)
    assert jnp.allclose(probs, r_probs, atol=2e-2)

    print("KERNEL_OK")
</pallas_src>

<mosaic_0001>
module attributes {stable_mosaic.version = 11 : i64} {
  func.func @_model_kernel(%arg0: i32, %arg1: memref<128x32xbf16, #tpu.memory_space<vmem>>, %arg2: memref<128x8xbf16, #tpu.memory_space<vmem>>, %arg3: memref<128x1xi32, #tpu.memory_space<vmem>>, %arg4: memref<32x32xbf16, #tpu.memory_space<vmem>>, %arg5: memref<1x32xf32, #tpu.memory_space<vmem>>, %arg6: memref<32x9xbf16, #tpu.memory_space<vmem>>, %arg7: memref<1x9xf32, #tpu.memory_space<vmem>>, %arg8: memref<128x16xf32, #tpu.memory_space<vmem>>) attributes {dimension_semantics = [#tpu.dimension_semantics<parallel>], iteration_bounds = array<i64: 1>, scalar_prefetch = 0 : i64, scratch_operands = 0 : i64, tpu.core_type = #tpu.core_type<tc>, window_params = [{transform_indices = @transform_0, window_bounds = array<i64: 128, 32>}, {transform_indices = @transform_1, window_bounds = array<i64: 128, 8>}, {transform_indices = @transform_2, window_bounds = array<i64: 128, 1>}, {pipeline_mode = #tpu.pipeline_mode<synchronous>, transform_indices = @transform_3, window_bounds = array<i64: 32, 32>}, {pipeline_mode = #tpu.pipeline_mode<synchronous>, transform_indices = @transform_4, window_bounds = array<i64: 1, 32>}, {pipeline_mode = #tpu.pipeline_mode<synchronous>, transform_indices = @transform_5, window_bounds = array<i64: 32, 9>}, {pipeline_mode = #tpu.pipeline_mode<synchronous>, transform_indices = @transform_6, window_bounds = array<i64: 1, 9>}, {transform_indices = @transform_7, window_bounds = array<i64: 128, 16>}]} {
    %c0 = arith.constant 0 : index
    %c0_0 = arith.constant 0 : index
    %0 = vector.load %arg1[%c0, %c0_0] : memref<128x32xbf16, #tpu.memory_space<vmem>>, vector<128x32xbf16>
    %c0_1 = arith.constant 0 : index
    %c0_2 = arith.constant 0 : index
    %1 = vector.load %arg4[%c0_1, %c0_2] : memref<32x32xbf16, #tpu.memory_space<vmem>>, vector<32x32xbf16>
    %cst = arith.constant dense<0.000000e+00> : vector<128x32xf32>
    %2 = tpu.matmul %0, %1, %cst {dimension_numbers = #tpu.dot_dimension_numbers<[1], [0], [0], [1], [0, 0, 1, 1], [], []>} : vector<128x32xbf16>, vector<32x32xbf16>, vector<128x32xf32> -> vector<128x32xf32>
    %c0_3 = arith.constant 0 : index
    %c0_4 = arith.constant 0 : index
    %3 = vector.load %arg5[%c0_3, %c0_4] : memref<1x32xf32, #tpu.memory_space<vmem>>, vector<1x32xf32>
    %4 = vector.broadcast %3 : vector<1x32xf32> to vector<128x32xf32>
    %5 = arith.addf %2, %4 : vector<128x32xf32>
    %cst_5 = arith.constant 0.000000e+00 : f32
    %6 = vector.broadcast %cst_5 : f32 to vector<128x32xf32>
    %7 = arith.maximumf %5, %6 : vector<128x32xf32>
    %8 = arith.truncf %7 : vector<128x32xf32> to vector<128x32xbf16>
    %c0_6 = arith.constant 0 : index
    %c0_7 = arith.constant 0 : index
    %9 = vector.load %arg6[%c0_6, %c0_7] : memref<32x9xbf16, #tpu.memory_space<vmem>>, vector<32x9xbf16>
    %cst_8 = arith.constant dense<0.000000e+00> : vector<128x9xf32>
    %10 = tpu.matmul %8, %9, %cst_8 {dimension_numbers = #tpu.dot_dimension_numbers<[1], [0], [0], [1], [0, 0, 1, 1], [], []>} : vector<128x32xbf16>, vector<32x9xbf16>, vector<128x9xf32> -> vector<128x9xf32>
    %c0_9 = arith.constant 0 : index
    %c0_10 = arith.constant 0 : index
    %11 = vector.load %arg7[%c0_9, %c0_10] : memref<1x9xf32, #tpu.memory_space<vmem>>, vector<1x9xf32>
    %12 = vector.broadcast %11 : vector<1x9xf32> to vector<128x9xf32>
    %13 = arith.addf %10, %12 : vector<128x9xf32>
    %14 = vector.extract_strided_slice %13 {offsets = [0, 0], sizes = [128, 8], strides = [1, 1]} : vector<128x9xf32> to vector<128x8xf32>
    %15 = vector.extract_strided_slice %13 {offsets = [0, 8], sizes = [128, 1], strides = [1, 1]} : vector<128x9xf32> to vector<128x1xf32>
    %c0_11 = arith.constant 0 : index
    %c0_12 = arith.constant 0 : index
    %16 = vector.load %arg2[%c0_11, %c0_12] : memref<128x8xbf16, #tpu.memory_space<vmem>>, vector<128x8xbf16>
    %cst_13 = arith.constant 0.000000e+00 : bf16
    %17 = vector.broadcast %cst_13 : bf16 to vector<128x8xbf16>
    %18 = arith.cmpf ogt, %16, %17 : vector<128x8xbf16>
    %c0_14 = arith.constant 0 : index
    %c0_15 = arith.constant 0 : index
    %19 = vector.load %arg3[%c0_14, %c0_15] : memref<128x1xi32, #tpu.memory_space<vmem>>, vector<128x1xi32>
    %cst_16 = arith.constant -1.000000e+09 : f32
    %20 = vector.broadcast %cst_16 : f32 to vector<128x8xf32>
    %21 = arith.select %18, %14, %20 : vector<128x8xi1>, vector<128x8xf32>
    %cst_17 = arith.constant dense<0xFF800000> : vector<128xf32>
    %22 = vector.multi_reduction <maximumf>, %21, %cst_17 [1] : vector<128x8xf32> to vector<128xf32>
    %23 = vector.shape_cast %22 : vector<128xf32> to vector<128x1xf32>
    %24 = vector.broadcast %23 : vector<128x1xf32> to vector<128x8xf32>
    %25 = arith.subf %21, %24 : vector<128x8xf32>
    %26 = math.exp %25 : vector<128x8xf32>
    %cst_18 = arith.constant dense<0.000000e+00> : vector<128xf32>
    %27 = vector.multi_reduction <add>, %26, %cst_18 [1] : vector<128x8xf32> to vector<128xf32>
    %28 = vector.shape_cast %27 : vector<128xf32> to vector<128x1xf32>
    %29 = math.log %28 : vector<128x1xf32>
    %30 = arith.addf %23, %29 : vector<128x1xf32>
    %31 = vector.broadcast %30 : vector<128x1xf32> to vector<128x8xf32>
    %32 = arith.subf %21, %31 : vector<128x8xf32>
    %33 = math.exp %32 : vector<128x8xf32>
    %34 = tpu.iota {dimensions = array<i32: 1>} : vector<128x8xi32>
    %35 = vector.broadcast %19 : vector<128x1xi32> to vector<128x8xi32>
    %36 = arith.cmpi eq, %34, %35 : vector<128x8xi32>
    %37 = arith.extui %36 : vector<128x8xi1> to vector<128x8xi32>
    %38 = arith.sitofp %37 : vector<128x8xi32> to vector<128x8xf32>
    %39 = arith.mulf %38, %32 : vector<128x8xf32>
    %cst_19 = arith.constant dense<0.000000e+00> : vector<128xf32>
    %40 = vector.multi_reduction <add>, %39, %cst_19 [1] : vector<128x8xf32> to vector<128xf32>
    %41 = vector.shape_cast %40 : vector<128xf32> to vector<128x1xf32>
    %42 = arith.mulf %33, %32 : vector<128x8xf32>
    %cst_20 = arith.constant 0.000000e+00 : f32
    %43 = vector.broadcast %cst_20 : f32 to vector<128x8xf32>
    %44 = arith.select %18, %42, %43 : vector<128x8xi1>, vector<128x8xf32>
    %cst_21 = arith.constant dense<0.000000e+00> : vector<128xf32>
    %45 = vector.multi_reduction <add>, %44, %cst_21 [1] : vector<128x8xf32> to vector<128xf32>
    %46 = vector.shape_cast %45 : vector<128xf32> to vector<128x1xf32>
    %cst_22 = arith.constant 0.000000e+00 : f32
    %47 = vector.broadcast %cst_22 : f32 to vector<128x1xf32>
    %48 = arith.subf %47, %46 : vector<128x1xf32>
    %c0_23 = arith.constant 0 : index
    %c0_24 = arith.constant 0 : index
    %49 = vector.load %arg8[%c0_23, %c0_24] : memref<128x16xf32, #tpu.memory_space<vmem>>, vector<128x8xf32>
    tpu.vector_store %arg8[%c0_23, %c0_24], %33 {strides = array<i32>} : memref<128x16xf32, #tpu.memory_space<vmem>>, vector<128x8xf32>,
    %50 = tpu.concatenate %41, %48, %15 in 1 : vector<128x1xf32>, vector<128x1xf32>, vector<128x1xf32> -> vector<128x3xf32>
    %c0_25 = arith.constant 0 : index
    %c8 = arith.constant 8 : index
    %51 = vector.load %arg8[%c0_25, %c8] : memref<128x16xf32, #tpu.memory_space<vmem>>, vector<128x3xf32>
    tpu.vector_store %arg8[%c0_25, %c8], %50 {strides = array<i32>} : memref<128x16xf32, #tpu.memory_space<vmem>>, vector<128x3xf32>,
    return
  }
  func.func @transform_0(%arg0: i32) -> (i32, i32) {
    %c0_i32 = arith.constant 0 : i32
    %c0_i32_0 = arith.constant 0 : i32
    return %arg0, %c0_i32 : i32, i32
  }
  func.func @transform_1(%arg0: i32) -> (i32, i32) {
    %c0_i32 = arith.constant 0 : i32
    %c0_i32_0 = arith.constant 0 : i32
    return %arg0, %c0_i32 : i32, i32
  }
  func.func @transform_2(%arg0: i32) -> (i32, i32) {
    %c0_i32 = arith.constant 0 : i32
    %c0_i32_0 = arith.constant 0 : i32
    return %arg0, %c0_i32 : i32, i32
  }
  func.func @transform_3(%arg0: i32) -> (i32, i32) {
    %c0_i32 = arith.constant 0 : i32
    %c0_i32_0 = arith.constant 0 : i32
    %c0_i32_1 = arith.constant 0 : i32
    return %c0_i32, %c0_i32_0 : i32, i32
  }
  func.func @transform_4(%arg0: i32) -> (i32, i32) {
    %c0_i32 = arith.constant 0 : i32
    %c0_i32_0 = arith.constant 0 : i32
    %c0_i32_1 = arith.constant 0 : i32
    return %c0_i32, %c0_i32_0 : i32, i32
  }
  func.func @transform_5(%arg0: i32) -> (i32, i32) {
    %c0_i32 = arith.constant 0 : i32
    %c0_i32_0 = arith.constant 0 : i32
    %c0_i32_1 = arith.constant 0 : i32
    return %c0_i32, %c0_i32_0 : i32, i32
  }
  func.func @transform_6(%arg0: i32) -> (i32, i32) {
    %c0_i32 = arith.constant 0 : i32
    %c0_i32_0 = arith.constant 0 : i32
    %c0_i32_1 = arith.constant 0 : i32
    return %c0_i32, %c0_i32_0 : i32, i32
  }
  func.func @transform_7(%arg0: i32) -> (i32, i32) {
    %c0_i32 = arith.constant 0 : i32
    %c0_i32_0 = arith.constant 0 : i32
    return %arg0, %c0_i32 : i32, i32
  }
}

</mosaic_0001>

<llo_original>
// kernel: squeeze.3
$region0: #{squeeze.3}
  %s0 = inlined_call_operand.vmem [shape: f32[8], index: 0, kind: input, shape index: {}]
  %s1 = inlined_call_operand.hbm [shape: f32[2,4], index: 1, kind: output, shape index: {}]
  $region1: #{squeeze.3} parent=0
    #allocation0 [shape = 'u8[1024]{0}', space=vmem, size = 0x400, scoped, tag = 'operand span for operand 1']
    #allocation1 [shape = 's32[1]{0}', space=sflag, size = 0x4, scoped, tag = 'scoped memory for squeeze.3']
    #allocation2 [shape = 'u8[4096]{0}', space=vmem, size = 0x1000, scoped, tag = 'scoped mem for output reshape']
    #allocation3 [shape = 'u8[4096]{0}', space=vmem, size = 0x1000, scoped, tag = 'scoped mem for input reshape']
    %2 = vsyncpa [#allocation1], 0
    %s4 = sshll.u32 1, 1
    %s5 = ssub.s32 %s4, 1
    %v6 = vld [vmem:[%s0] sm:%s5]
    %7 = vst [vmem:[#allocation3] sm:%s5] %v6
    %v8 = vld [vmem:[#allocation3] sm:$0x1]
    %vm9 = vcmask 31744
    %10 = vst.msk [vmem:[#allocation2] sm:$0x1] %vm9, %v8
    %v11 = vld [vmem:[#allocation3] sm:$0x1]
    %12 = vrot.lane.b32.xlu0 %v11, 124
    %v13 = vpop.permute.xlu0 %12
    %vm14 = vcmask 31744
    %s15 = scalar_lea.vmem [#allocation2], 1
    %16 = vst.msk [vmem:[%s15] sm:$0x1] %vm14, %v13
    %s18 = sshll.u32 1, 2
    %s19 = ssub.s32 %s18, 1
    %v21 = vld [vmem:[#allocation2] sm:%s19]
    %s22 = sshll.u32 1, 2
    %s23 = ssub.s32 %s22, 1
    %24 = vst [vmem:[#allocation0] sm:%s23] %v21
    %s26 = ssub.s32 32, 32
    %27 = vsyncadd [#allocation1], %s26
    %s29 = sshll.u32 [#allocation0], 4
    %s30 = int_to_ptr.vmem [resolvable:$true] %s29
    %32 = dma.vmem_to_hbm [thread:$0]  %s30, 32, %s1, [#allocation1]
    %33 = dma.done [#allocation1], 32
    %34 = vsyncpa [#allocation1], 1

// kernel: mcts_forward.1
$region0: #{mcts_forward.1}
  #allocation0 [shape = 'u32[]', space=smem, size = 0x4, offset = 0x4, fixed_abs, tag = 'smem constant byte address 0x4 - core index']
  #allocation1 [shape = 'u32[144,128]{1,0:T(1,128)}', space=vmem, size = 0x12000, scoped, tag = 'internal scratch']
  %s0 = inlined_call_operand.vmem [shape: bf16[128,32], index: 0, kind: input, shape index: {}]
  %s1 = inlined_call_operand.vmem [shape: bf16[128,8], index: 1, kind: input, shape index: {}]
  %s2 = inlined_call_operand.vmem [shape: s32[128,1], index: 2, kind: input, shape index: {}]
  %s3 = inlined_call_operand.vmem [shape: bf16[32,32], index: 3, kind: input, shape index: {}]
  %s4 = inlined_call_operand.vmem [shape: f32[1,32], index: 4, kind: input, shape index: {}]
  %s5 = inlined_call_operand.vmem [shape: bf16[32,9], index: 5, kind: input, shape index: {}]
  %s6 = inlined_call_operand.vmem [shape: f32[1,9], index: 6, kind: input, shape index: {}]
  %s7 = inlined_call_operand.vmem [shape: f32[128,16], index: 7, kind: output, shape index: {}]
  %s8 = sld [smem:[#allocation0]]
  $region38: #{mcts_forward.1} parent=0
    _
  %s10 = ssub.s32 1, %s8
  %s11 = scalar_select 0, %s10, %s8
  // Predicated region
  $region2: #{mcts_forward.1} parent=0 // pred_check
    _
  $region3: #{mcts_forward.1} parent=0 // pred_check_branch
    %13 = sbr.rel (0) target = $region5
  $region4: #{mcts_forward.1} parent=0 // pred_region
    _
  $region5: #{mcts_forward.1} parent=0 // pred_fallthru
    _
  // Predicated region
  $region6: #{mcts_forward.1} parent=0 // pred_check
    _
  $region7: #{mcts_forward.1} parent=0 // pred_check_branch
    %15 = sbr.rel (0) target = $region9
  $region8: #{mcts_forward.1} parent=0 // pred_region
    _
  $region9: #{mcts_forward.1} parent=0 // pred_fallthru
    _
  // Predicated region
  $region10: #{mcts_forward.1} parent=0 // pred_check
    _
  $region11: #{mcts_forward.1} parent=0 // pred_check_branch
    %17 = sbr.rel (0) target = $region13
  $region12: #{mcts_forward.1} parent=0 // pred_region
    _
  $region13: #{mcts_forward.1} parent=0 // pred_fallthru
    _
  // Predicated region
  $region14: #{mcts_forward.1} parent=0 // pred_check
    _
  $region15: #{mcts_forward.1} parent=0 // pred_check_branch
    %19 = sbr.rel (0) target = $region17
  $region16: #{mcts_forward.1} parent=0 // pred_region
    _
  $region17: #{mcts_forward.1} parent=0 // pred_fallthru
    _
  // Predicated region
  $region18: #{mcts_forward.1} parent=0 // pred_check
    _
  $region19: #{mcts_forward.1} parent=0 // pred_check_branch
    %21 = sbr.rel (0) target = $region21
  $region20: #{mcts_forward.1} parent=0 // pred_region
    _
  $region21: #{mcts_forward.1} parent=0 // pred_fallthru
    _
  // Predicated region
  $region22: #{mcts_forward.1} parent=0 // pred_check
    _
  $region23: #{mcts_forward.1} parent=0 // pred_check_branch
    %23 = sbr.rel (0) target = $region25
  $region24: #{mcts_forward.1} parent=0 // pred_region
    _
  $region25: #{mcts_forward.1} parent=0 // pred_fallthru
    _
  // Predicated region
  $region26: #{mcts_forward.1} parent=0 // pred_check
    _
  $region27: #{mcts_forward.1} parent=0 // pred_check_branch
    %25 = sbr.rel (0) target = $region29
  $region28: #{mcts_forward.1} parent=0 // pred_region
    _
  $region29: #{mcts_forward.1} parent=0 // pred_fallthru
    _
  %v29 = vld [vmem:[%s0] sm:$0xf]
  %v30 = vld [vmem:[%s0 + $0x4] sm:$0xf]
  %v31 = vld [vmem:[%s0 + $0x8] sm:$0xf]
  %v32 = vld [vmem:[%s0 + $0xc] sm:$0xf]
  %v33 = vld [vmem:[%s0 + $0x10] sm:$0xf]
  %v34 = vld [vmem:[%s0 + $0x14] sm:$0xf]
  %v35 = vld [vmem:[%s0 + $0x18] sm:$0xf]
  %v36 = vld [vmem:[%s0 + $0x1c] sm:$0xf]
  %v37 = vld [vmem:[%s0 + $0x20] sm:$0xf]
  %v38 = vld [vmem:[%s0 + $0x24] sm:$0xf]
  %v39 = vld [vmem:[%s0 + $0x28] sm:$0xf]
  %v40 = vld [vmem:[%s0 + $0x2c] sm:$0xf]
  %v41 = vld [vmem:[%s0 + $0x30] sm:$0xf]
  %v42 = vld [vmem:[%s0 + $0x34] sm:$0xf]
  %v43 = vld [vmem:[%s0 + $0x38] sm:$0xf]
  %v44 = vld [vmem:[%s0 + $0x3c] sm:$0xf]
  %v45 = vld [vmem:[%s3] sm:$0xf]
  %v46 = vld [vmem:[%s3 + $0x4] sm:$0xf]
  %v47 = vld [vmem:[%s3 + $0x8] sm:$0xf]
  %v48 = vld [vmem:[%s3 + $0xc] sm:$0xf]
  %v49 = vld [vmem:[%s4] sm:$0x1]
  %v51 = vlaneseq
  %v52 = vshrl.u32 %v51, 7
  %v53 = vsub.s32 0, %v52
  %v54 = vrot.slane %v49, %v53
  %v72 = vunpack.c.l.b16 %v29
  %v73 = vunpack.c.l.b16 %v30
  %v74 = vunpack.c.l.b16 %v31
  %v75 = vunpack.c.l.b16 %v32
  %v76 = vunpack.c.l.b16 %v33
  %v77 = vunpack.c.l.b16 %v34
  %v78 = vunpack.c.l.b16 %v35
  %v79 = vunpack.c.l.b16 %v36
  %v80 = vunpack.c.l.b16 %v37
  %v81 = vunpack.c.l.b16 %v38
  %v82 = vunpack.c.l.b16 %v39
  %v83 = vunpack.c.l.b16 %v40
  %v84 = vunpack.c.l.b16 %v41
  %v85 = vunpack.c.l.b16 %v42
  %v86 = vunpack.c.l.b16 %v43
  %v87 = vunpack.c.l.b16 %v44
  %v88 = vpack.c.b16 %v73, %v72
  %v89 = vpack.c.b16 %v75, %v74
  %v90 = vpack.c.b16 %v77, %v76
  %v91 = vpack.c.b16 %v79, %v78
  %v92 = vpack.c.b16 %v81, %v80
  %v93 = vpack.c.b16 %v83, %v82
  %v94 = vpack.c.b16 %v85, %v84
  %v95 = vpack.c.b16 %v87, %v86
  %v100 = vunpack.c.l.b16 %v45
  %v101 = vunpack.c.l.b16 %v46
  %v102 = vunpack.c.l.b16 %v47
  %v103 = vunpack.c.l.b16 %v48
  %v104 = vpack.c.b16 %v101, %v100
  %v105 = vpack.c.b16 %v103, %v102
  %vm108 = vcmask 261120
  %v110 = vsel %vm108, %v88, 0
  %v113 = vsel %vm108, %v89, 0
  %v116 = vsel %vm108, %v90, 0
  %v119 = vsel %vm108, %v91, 0
  %v122 = vsel %vm108, %v92, 0
  %v125 = vsel %vm108, %v93, 0
  %v128 = vsel %vm108, %v94, 0
  %v131 = vsel %vm108, %v95, 0
  %133 = vmatprep.subr.bf16.mxu0 0
  %134 = vmatpush1.bf16.msra.mxu0 0
  %135 = vmatprep.subr.bf16.mxu0 0
  %136 = vmatpush1.bf16.msra.mxu0 0
  %137 = vmatprep.subr.bf16.mxu0 0
  %138 = vmatpush1.bf16.msra.mxu0 0
  %139 = vmatprep.subr.bf16.mxu0 0
  %140 = vmatpush1.bf16.msra.mxu0 0
  %141 = vmatprep.subr.bf16.mxu0 0
  %142 = vmatpush1.bf16.msra.mxu0 0
  %143 = vmatprep.subr.bf16.mxu0 0
  %144 = vmatpush1.bf16.msra.mxu0 0
  %145 = vmatprep.subr.bf16.mxu0 0
  %146 = vmatpush1.bf16.msra.mxu0 %v105
  %147 = vmatprep.subr.bf16.mxu0 0
  %148 = vmatpush1.bf16.msra.mxu0 %v104
  %149 = vmatprep.subr.bf16.mxu0 0
  %150 = vmatpush2.bf16.msra.mxu0 0
  %151 = vmatprep.subr.bf16.mxu0 0
  %152 = vmatpush2.bf16.msra.mxu0 0
  %153 = vmatprep.subr.bf16.mxu0 0
  %154 = vmatpush2.bf16.msra.mxu0 0
  %155 = vmatprep.subr.bf16.mxu0 0
  %156 = vmatpush2.bf16.msra.mxu0 0
  %157 = vmatprep.subr.bf16.mxu0 0
  %158 = vmatpush2.bf16.msra.mxu0 0
  %159 = vmatprep.subr.bf16.mxu0 0
  %160 = vmatpush2.bf16.msra.mxu0 0
  %161 = vmatprep.subr.bf16.mxu0 0
  %162 = vmatpush2.bf16.msra.mxu0 0
  %163 = vmatprep.subr.bf16.mxu0 0
  %164 = vmatpush2.bf16.msra.mxu0 0
  %165 = vmatprep.mubr.bf16.mxu0 0
  %166 = vmatmul.mubr.bf16.gmra.mxu0 %v110
  %v167 = vpop.f32.mrf.mxu0
  %v168 = vadd.f32 %v54, %v167
  %v169 = vpop.f32.mrf.mxu0
  %v170 = vpop.f32.mrf.mxu0
  %v171 = vadd.f32 %v54, %v170
  %v172 = vpop.f32.mrf.mxu0
  %173 = vmatprep.mubr.bf16.mxu0 0
  %174 = vmatmul.mubr.bf16.gmra.mxu0 %v113
  %v175 = vpop.f32.mrf.mxu0
  %v176 = vadd.f32 %v54, %v175
  %v177 = vpop.f32.mrf.mxu0
  %v178 = vpop.f32.mrf.mxu0
  %v179 = vadd.f32 %v54, %v178
  %v180 = vpop.f32.mrf.mxu0
  %181 = vmatprep.mubr.bf16.mxu0 0
  %182 = vmatmul.mubr.bf16.gmra.mxu0 %v116
  %v183 = vpop.f32.mrf.mxu0
  %v184 = vadd.f32 %v54, %v183
  %v185 = vpop.f32.mrf.mxu0
  %v186 = vpop.f32.mrf.mxu0
  %v187 = vadd.f32 %v54, %v186
  %v188 = vpop.f32.mrf.mxu0
  %189 = vmatprep.mubr.bf16.mxu0 0
  %190 = vmatmul.mubr.bf16.gmra.mxu0 %v119
  %v191 = vpop.f32.mrf.mxu0
  %v192 = vadd.f32 %v54, %v191
  %v193 = vpop.f32.mrf.mxu0
  %v194 = vpop.f32.mrf.mxu0
  %v195 = vadd.f32 %v54, %v194
  %v196 = vpop.f32.mrf.mxu0
  %197 = vmatprep.mubr.bf16.mxu0 0
  %198 = vmatmul.mubr.bf16.gmra.mxu0 %v122
  %v199 = vpop.f32.mrf.mxu0
  %v200 = vadd.f32 %v54, %v199
  %v201 = vpop.f32.mrf.mxu0
  %v202 = vpop.f32.mrf.mxu0
  %v203 = vadd.f32 %v54, %v202
  %v204 = vpop.f32.mrf.mxu0
  %205 = vmatprep.mubr.bf16.mxu0 0
  %206 = vmatmul.mubr.bf16.gmra.mxu0 %v125
  %v207 = vpop.f32.mrf.mxu0
  %v208 = vadd.f32 %v54, %v207
  %v209 = vpop.f32.mrf.mxu0
  %v210 = vpop.f32.mrf.mxu0
  %v211 = vadd.f32 %v54, %v210
  %v212 = vpop.f32.mrf.mxu0
  %213 = vmatprep.mubr.bf16.mxu0 0
  %214 = vmatmul.mubr.bf16.gmra.mxu0 %v128
  %v215 = vpop.f32.mrf.mxu0
  %v216 = vadd.f32 %v54, %v215
  %v217 = vpop.f32.mrf.mxu0
  %v218 = vpop.f32.mrf.mxu0
  %v219 = vadd.f32 %v54, %v218
  %v220 = vpop.f32.mrf.mxu0
  %221 = vmatprep.mubr.bf16.mxu0 0
  %222 = vmatmul.mubr.bf16.gmra.mxu0 %v131
  %v223 = vpop.f32.mrf.mxu0
  %v224 = vadd.f32 %v54, %v223
  %v225 = vpop.f32.mrf.mxu0
  %v226 = vpop.f32.mrf.mxu0
  %v227 = vadd.f32 %v54, %v226
  %v228 = vpop.f32.mrf.mxu0
  %229 = vdwg.mxu0
  %v230 = vmax.f32 %v168, 0.0
  %v231 = vmax.f32 %v171, 0.0
  %v232 = vmax.f32 %v176, 0.0
  %v233 = vmax.f32 %v179, 0.0
  %v234 = vmax.f32 %v184, 0.0
  %v235 = vmax.f32 %v187, 0.0
  %v236 = vmax.f32 %v192, 0.0
  %v237 = vmax.f32 %v195, 0.0
  %v238 = vmax.f32 %v200, 0.0
  %v239 = vmax.f32 %v203, 0.0
  %v240 = vmax.f32 %v208, 0.0
  %v241 = vmax.f32 %v211, 0.0
  %v242 = vmax.f32 %v216, 0.0
  %v243 = vmax.f32 %v219, 0.0
  %v244 = vmax.f32 %v224, 0.0
  %v245 = vmax.f32 %v227, 0.0
  %v246 = vpack.c.bf16 %v231, %v230
  %v247 = vpack.c.bf16 %v233, %v232
  %v248 = vpack.c.bf16 %v235, %v234
  %v249 = vpack.c.bf16 %v237, %v236
  %v250 = vpack.c.bf16 %v239, %v238
  %v251 = vpack.c.bf16 %v241, %v240
  %v252 = vpack.c.bf16 %v243, %v242
  %v253 = vpack.c.bf16 %v245, %v244
  %v254 = vld [vmem:[%s5] sm:$0xf]
  %v255 = vld [vmem:[%s5 + $0x4] sm:$0xf]
  %v256 = vld [vmem:[%s5 + $0x8] sm:$0xf]
  %v257 = vld [vmem:[%s5 + $0xc] sm:$0xf]
  %v258 = vld [vmem:[%s6] sm:$0x1]
  %v260 = vlaneseq
  %v261 = vshrl.u32 %v260, 7
  %v262 = vsub.s32 0, %v261
  %v263 = vrot.slane %v258, %v262
  %v269 = vunpack.c.l.b16 %v254
  %v270 = vunpack.c.l.b16 %v255
  %v271 = vunpack.c.l.b16 %v256
  %v272 = vunpack.c.l.b16 %v257
  %v273 = vpack.c.b16 %v270, %v269
  %v274 = vpack.c.b16 %v272, %v271
  %v278 = vsel %vm108, %v246, 0
  %v281 = vsel %vm108, %v247, 0
  %v284 = vsel %vm108, %v248, 0
  %v287 = vsel %vm108, %v249, 0
  %v290 = vsel %vm108, %v250, 0
  %v293 = vsel %vm108, %v251, 0
  %v296 = vsel %vm108, %v252, 0
  %v299 = vsel %vm108, %v253, 0
  %301 = vmatprep.subr.bf16.mxu0 0
  %302 = vmatpush1.bf16.msra.mxu0 0
  %303 = vmatprep.subr.bf16.mxu0 0
  %304 = vmatpush1.bf16.msra.mxu0 0
  %305 = vmatprep.subr.bf16.mxu0 0
  %306 = vmatpush1.bf16.msra.mxu0 0
  %307 = vmatprep.subr.bf16.mxu0 0
  %308 = vmatpush1.bf16.msra.mxu0 0
  %309 = vmatprep.subr.bf16.mxu0 0
  %310 = vmatpush1.bf16.msra.mxu0 0
  %311 = vmatprep.subr.bf16.mxu0 0
  %312 = vmatpush1.bf16.msra.mxu0 0
  %313 = vmatprep.subr.bf16.mxu0 0
  %314 = vmatpush1.bf16.msra.mxu0 %v274
  %315 = vmatprep.subr.bf16.mxu0 0
  %316 = vmatpush1.bf16.msra.mxu0 %v273
  %317 = vmatprep.subr.bf16.mxu0 0
  %318 = vmatpush2.bf16.msra.mxu0 0
  %319 = vmatprep.subr.bf16.mxu0 0
  %320 = vmatpush2.bf16.msra.mxu0 0
  %321 = vmatprep.subr.bf16.mxu0 0
  %322 = vmatpush2.bf16.msra.mxu0 0
  %323 = vmatprep.subr.bf16.mxu0 0
  %324 = vmatpush2.bf16.msra.mxu0 0
  %325 = vmatprep.subr.bf16.mxu0 0
  %326 = vmatpush2.bf16.msra.mxu0 0
  %327 = vmatprep.subr.bf16.mxu0 0
  %328 = vmatpush2.bf16.msra.mxu0 0
  %329 = vmatprep.subr.bf16.mxu0 0
  %330 = vmatpush2.bf16.msra.mxu0 0
  %331 = vmatprep.subr.bf16.mxu0 0
  %332 = vmatpush2.bf16.msra.mxu0 0
  %333 = vmatprep.mubr.bf16.mxu0 0
  %334 = vmatmul.mubr.bf16.gmra.mxu0 %v278
  %v335 = vpop.f32.mrf.mxu0
  %v336 = vadd.f32 %v263, %v335
  %v337 = vpop.f32.mrf.mxu0
  %v338 = vpop.f32.mrf.mxu0
  %v339 = vadd.f32 %v263, %v338
  %v340 = vpop.f32.mrf.mxu0
  %341 = vmatprep.mubr.bf16.mxu0 0
  %342 = vmatmul.mubr.bf16.gmra.mxu0 %v281
  %v343 = vpop.f32.mrf.mxu0
  %v344 = vadd.f32 %v263, %v343
  %v345 = vpop.f32.mrf.mxu0
  %v346 = vpop.f32.mrf.mxu0
  %v347 = vadd.f32 %v263, %v346
  %v348 = vpop.f32.mrf.mxu0
  %349 = vmatprep.mubr.bf16.mxu0 0
  %350 = vmatmul.mubr.bf16.gmra.mxu0 %v284
  %v351 = vpop.f32.mrf.mxu0
  %v352 = vadd.f32 %v263, %v351
  %v353 = vpop.f32.mrf.mxu0
  %v354 = vpop.f32.mrf.mxu0
  %v355 = vadd.f32 %v263, %v354
  %v356 = vpop.f32.mrf.mxu0
  %357 = vmatprep.mubr.bf16.mxu0 0
  %358 = vmatmul.mubr.bf16.gmra.mxu0 %v287
  %v359 = vpop.f32.mrf.mxu0
  %v360 = vadd.f32 %v263, %v359
  %v361 = vpop.f32.mrf.mxu0
  %v362 = vpop.f32.mrf.mxu0
  %v363 = vadd.f32 %v263, %v362
  %v364 = vpop.f32.mrf.mxu0
  %365 = vmatprep.mubr.bf16.mxu0 0
  %366 = vmatmul.mubr.bf16.gmra.mxu0 %v290
  %v367 = vpop.f32.mrf.mxu0
  %v368 = vadd.f32 %v263, %v367
  %v369 = vpop.f32.mrf.mxu0
  %v370 = vpop.f32.mrf.mxu0
  %v371 = vadd.f32 %v263, %v370
  %v372 = vpop.f32.mrf.mxu0
  %373 = vmatprep.mubr.bf16.mxu0 0
  %374 = vmatmul.mubr.bf16.gmra.mxu0 %v293
  %v375 = vpop.f32.mrf.mxu0
  %v376 = vadd.f32 %v263, %v375
  %v377 = vpop.f32.mrf.mxu0
  %v378 = vpop.f32.mrf.mxu0
  %v379 = vadd.f32 %v263, %v378
  %v380 = vpop.f32.mrf.mxu0
  %381 = vmatprep.mubr.bf16.mxu0 0
  %382 = vmatmul.mubr.bf16.gmra.mxu0 %v296
  %v383 = vpop.f32.mrf.mxu0
  %v384 = vadd.f32 %v263, %v383
  %v385 = vpop.f32.mrf.mxu0
  %v386 = vpop.f32.mrf.mxu0
  %v387 = vadd.f32 %v263, %v386
  %v388 = vpop.f32.mrf.mxu0
  %389 = vmatprep.mubr.bf16.mxu0 0
  %390 = vmatmul.mubr.bf16.gmra.mxu0 %v299
  %v391 = vpop.f32.mrf.mxu0
  %v392 = vadd.f32 %v263, %v391
  %v393 = vpop.f32.mrf.mxu0
  %v394 = vpop.f32.mrf.mxu0
  %v395 = vadd.f32 %v263, %v394
  %v396 = vpop.f32.mrf.mxu0
  %397 = vdwg.mxu0
  %v398 = vld [vmem:[%s1] sm:$0xf]
  %v399 = vld [vmem:[%s1 + $0x4] sm:$0xf]
  %v400 = vld [vmem:[%s1 + $0x8] sm:$0xf]
  %v401 = vld [vmem:[%s1 + $0xc] sm:$0xf]
  %v402 = vld [vmem:[%s1 + $0x10] sm:$0xf]
  %v403 = vld [vmem:[%s1 + $0x14] sm:$0xf]
  %v404 = vld [vmem:[%s1 + $0x18] sm:$0xf]
  %v405 = vld [vmem:[%s1 + $0x1c] sm:$0xf]
  %v406 = vld [vmem:[%s1 + $0x20] sm:$0xf]
  %v407 = vld [vmem:[%s1 + $0x24] sm:$0xf]
  %v408 = vld [vmem:[%s1 + $0x28] sm:$0xf]
  %v409 = vld [vmem:[%s1 + $0x2c] sm:$0xf]
  %v410 = vld [vmem:[%s1 + $0x30] sm:$0xf]
  %v411 = vld [vmem:[%s1 + $0x34] sm:$0xf]
  %v412 = vld [vmem:[%s1 + $0x38] sm:$0xf]
  %v413 = vld [vmem:[%s1 + $0x3c] sm:$0xf]
  %vm414 = vcmp.gt.bf16.partialorder %v398, 0
  %vm415 = vcmp.gt.bf16.partialorder %v399, 0
  %vm416 = vcmp.gt.bf16.partialorder %v400, 0
  %vm417 = vcmp.gt.bf16.partialorder %v401, 0
  %vm418 = vcmp.gt.bf16.partialorder %v402, 0
  %vm419 = vcmp.gt.bf16.partialorder %v403, 0
  %vm420 = vcmp.gt.bf16.partialorder %v404, 0
  %vm421 = vcmp.gt.bf16.partialorder %v405, 0
  %vm422 = vcmp.gt.bf16.partialorder %v406, 0
  %vm423 = vcmp.gt.bf16.partialorder %v407, 0
  %vm424 = vcmp.gt.bf16.partialorder %v408, 0
  %vm425 = vcmp.gt.bf16.partialorder %v409, 0
  %vm426 = vcmp.gt.bf16.partialorder %v410, 0
  %vm427 = vcmp.gt.bf16.partialorder %v411, 0
  %vm428 = vcmp.gt.bf16.partialorder %v412, 0
  %vm429 = vcmp.gt.bf16.partialorder %v413, 0
  %v430 = vld [vmem:[%s2] sm:$0xff]
  %v431 = vld [vmem:[%s2 + $0x8] sm:$0xff]
  %v432 = vld [vmem:[%s2 + $0x10] sm:$0xff]
  %v433 = vld [vmem:[%s2 + $0x18] sm:$0xff]
  %v434 = vld [vmem:[%s2 + $0x20] sm:$0xff]
  %v435 = vld [vmem:[%s2 + $0x28] sm:$0xff]
  %v436 = vld [vmem:[%s2 + $0x30] sm:$0xff]
  %v437 = vld [vmem:[%s2 + $0x38] sm:$0xff]
  %v438 = vld [vmem:[%s2 + $0x40] sm:$0xff]
  %v439 = vld [vmem:[%s2 + $0x48] sm:$0xff]
  %v440 = vld [vmem:[%s2 + $0x50] sm:$0xff]
  %v441 = vld [vmem:[%s2 + $0x58] sm:$0xff]
  %v442 = vld [vmem:[%s2 + $0x60] sm:$0xff]
  %v443 = vld [vmem:[%s2 + $0x68] sm:$0xff]
  %v444 = vld [vmem:[%s2 + $0x70] sm:$0xff]
  %v445 = vld [vmem:[%s2 + $0x78] sm:$0xff]
  %v446 = vsel %vm414, 65537, 0
  %v447 = vsel %vm415, 65537, 0
  %v448 = vsel %vm416, 65537, 0
  %v449 = vsel %vm417, 65537, 0
  %v450 = vsel %vm418, 65537, 0
  %v451 = vsel %vm419, 65537, 0
  %v452 = vsel %vm420, 65537, 0
  %v453 = vsel %vm421, 65537, 0
  %v454 = vsel %vm422, 65537, 0
  %v455 = vsel %vm423, 65537, 0
  %v456 = vsel %vm424, 65537, 0
  %v457 = vsel %vm425, 65537, 0
  %v458 = vsel %vm426, 65537, 0
  %v459 = vsel %vm427, 65537, 0
  %v460 = vsel %vm428, 65537, 0
  %v461 = vsel %vm429, 65537, 0
  %v462 = vunpack.c.l.b16 %v446
  %v463 = vunpack.c.l.b16 %v447
  %v464 = vunpack.c.l.b16 %v448
  %v465 = vunpack.c.l.b16 %v449
  %v466 = vunpack.c.l.b16 %v450
  %v467 = vunpack.c.l.b16 %v451
  %v468 = vunpack.c.l.b16 %v452
  %v469 = vunpack.c.l.b16 %v453
  %v470 = vunpack.c.l.b16 %v454
  %v471 = vunpack.c.l.b16 %v455
  %v472 = vunpack.c.l.b16 %v456
  %v473 = vunpack.c.l.b16 %v457
  %v474 = vunpack.c.l.b16 %v458
  %v475 = vunpack.c.l.b16 %v459
  %v476 = vunpack.c.l.b16 %v460
  %v477 = vunpack.c.l.b16 %v461
  %vm478 = vcmp.ne.s32.totalorder %v462, 0
  %vm479 = vcmp.ne.s32.totalorder %v463, 0
  %vm480 = vcmp.ne.s32.totalorder %v464, 0
  %vm481 = vcmp.ne.s32.totalorder %v465, 0
  %vm482 = vcmp.ne.s32.totalorder %v466, 0
  %vm483 = vcmp.ne.s32.totalorder %v467, 0
  %vm484 = vcmp.ne.s32.totalorder %v468, 0
  %vm485 = vcmp.ne.s32.totalorder %v469, 0
  %vm486 = vcmp.ne.s32.totalorder %v470, 0
  %vm487 = vcmp.ne.s32.totalorder %v471, 0
  %vm488 = vcmp.ne.s32.totalorder %v472, 0
  %vm489 = vcmp.ne.s32.totalorder %v473, 0
  %vm490 = vcmp.ne.s32.totalorder %v474, 0
  %vm491 = vcmp.ne.s32.totalorder %v475, 0
  %vm492 = vcmp.ne.s32.totalorder %v476, 0
  %vm493 = vcmp.ne.s32.totalorder %v477, 0
  %v494 = vsel %vm478, %v336, -1e+09
  %v495 = vsel %vm479, %v339, -1e+09
  %v496 = vsel %vm480, %v344, -1e+09
  %v497 = vsel %vm481, %v347, -1e+09
  %v498 = vsel %vm482, %v352, -1e+09
  %v499 = vsel %vm483, %v355, -1e+09
  %v500 = vsel %vm484, %v360, -1e+09
  %v501 = vsel %vm485, %v363, -1e+09
  %v502 = vsel %vm486, %v368, -1e+09
  %v503 = vsel %vm487, %v371, -1e+09
  %v504 = vsel %vm488, %v376, -1e+09
  %v505 = vsel %vm489, %v379, -1e+09
  %v506 = vsel %vm490, %v384, -1e+09
  %v507 = vsel %vm491, %v387, -1e+09
  %v508 = vsel %vm492, %v392, -1e+09
  %v509 = vsel %vm493, %v395, -1e+09
  %vm510 = vcmask 64512
  %v511 = vsel %vm510, %v494, -inf
  %512 = vmax.xlane.f32.xlu0 %v511
  %v513 = vpop.xlane.xlu0 %512
  %v514 = vsel %vm510, %v495, -inf
  %515 = vmax.xlane.f32.xlu0 %v514
  %v516 = vpop.xlane.xlu0 %515
  %v517 = vsel %vm510, %v496, -inf
  %518 = vmax.xlane.f32.xlu0 %v517
  %v519 = vpop.xlane.xlu0 %518
  %v520 = vsel %vm510, %v497, -inf
  %521 = vmax.xlane.f32.xlu0 %v520
  %v522 = vpop.xlane.xlu0 %521
  %v523 = vsel %vm510, %v498, -inf
  %524 = vmax.xlane.f32.xlu0 %v523
  %v525 = vpop.xlane.xlu0 %524
  %v526 = vsel %vm510, %v499, -inf
  %527 = vmax.xlane.f32.xlu0 %v526
  %v528 = vpop.xlane.xlu0 %527
  %v529 = vsel %vm510, %v500, -inf
  %530 = vmax.xlane.f32.xlu0 %v529
  %v531 = vpop.xlane.xlu0 %530
  %v532 = vsel %vm510, %v501, -inf
  %533 = vmax.xlane.f32.xlu0 %v532
  %v534 = vpop.xlane.xlu0 %533
  %v535 = vsel %vm510, %v502, -inf
  %536 = vmax.xlane.f32.xlu0 %v535
  %v537 = vpop.xlane.xlu0 %536
  %v538 = vsel %vm510, %v503, -inf
  %539 = vmax.xlane.f32.xlu0 %v538
  %v540 = vpop.xlane.xlu0 %539
  %v541 = vsel %vm510, %v504, -inf
  %542 = vmax.xlane.f32.xlu0 %v541
  %v543 = vpop.xlane.xlu0 %542
  %v544 = vsel %vm510, %v505, -inf
  %545 = vmax.xlane.f32.xlu0 %v544
  %v546 = vpop.xlane.xlu0 %545
  %v547 = vsel %vm510, %v506, -inf
  %548 = vmax.xlane.f32.xlu0 %v547
  %v549 = vpop.xlane.xlu0 %548
  %v550 = vsel %vm510, %v507, -inf
  %551 = vmax.xlane.f32.xlu0 %v550
  %v552 = vpop.xlane.xlu0 %551
  %v553 = vsel %vm510, %v508, -inf
  %554 = vmax.xlane.f32.xlu0 %v553
  %v555 = vpop.xlane.xlu0 %554
  %v556 = vsel %vm510, %v509, -inf
  %557 = vmax.xlane.f32.xlu0 %v556
  %v558 = vpop.xlane.xlu0 %557
  %v559 = vsub.f32 %v494, %v513
  %v560 = vsub.f32 %v495, %v516
  %v561 = vsub.f32 %v496, %v519
  %v562 = vsub.f32 %v497, %v522
  %v563 = vsub.f32 %v498, %v525
  %v564 = vsub.f32 %v499, %v528
  %v565 = vsub.f32 %v500, %v531
  %v566 = vsub.f32 %v501, %v534
  %v567 = vsub.f32 %v502, %v537
  %v568 = vsub.f32 %v503, %v540
  %v569 = vsub.f32 %v504, %v543
  %v570 = vsub.f32 %v505, %v546
  %v571 = vsub.f32 %v506, %v549
  %v572 = vsub.f32 %v507, %v552
  %v573 = vsub.f32 %v508, %v555
  %v574 = vsub.f32 %v509, %v558
  %v575 = vmul.f32 %v559, 1.442695
  %v576 = vpow.pop %v575
  %v577 = vmul.f32 %v560, 1.442695
  %v578 = vpow.pop %v577
  %v579 = vmul.f32 %v561, 1.442695
  %v580 = vpow.pop %v579
  %v581 = vmul.f32 %v562, 1.442695
  %v582 = vpow.pop %v581
  %v583 = vmul.f32 %v563, 1.442695
  %v584 = vpow.pop %v583
  %v585 = vmul.f32 %v564, 1.442695
  %v586 = vpow.pop %v585
  %v587 = vmul.f32 %v565, 1.442695
  %v588 = vpow.pop %v587
  %v589 = vmul.f32 %v566, 1.442695
  %v590 = vpow.pop %v589
  %v591 = vmul.f32 %v567, 1.442695
  %v592 = vpow.pop %v591
  %v593 = vmul.f32 %v568, 1.442695
  %v594 = vpow.pop %v593
  %v595 = vmul.f32 %v569, 1.442695
  %v596 = vpow.pop %v595
  %v597 = vmul.f32 %v570, 1.442695
  %v598 = vpow.pop %v597
  %v599 = vmul.f32 %v571, 1.442695
  %v600 = vpow.pop %v599
  %v601 = vmul.f32 %v572, 1.442695
  %v602 = vpow.pop %v601
  %v603 = vmul.f32 %v573, 1.442695
  %v604 = vpow.pop %v603
  %v605 = vmul.f32 %v574, 1.442695
  %v606 = vpow.pop %v605
  %v607 = vsel %vm510, %v576, 0.0
  %608 = vadd.xlane.f32.xlu0 %v607
  %v609 = vpop.xlane.xlu0 %608
  %v610 = vsel %vm510, %v578, 0.0
  %611 = vadd.xlane.f32.xlu0 %v610
  %v612 = vpop.xlane.xlu0 %611
  %v613 = vsel %vm510, %v580, 0.0
  %614 = vadd.xlane.f32.xlu0 %v613
  %v615 = vpop.xlane.xlu0 %614
  %v616 = vsel %vm510, %v582, 0.0
  %617 = vadd.xlane.f32.xlu0 %v616
  %v618 = vpop.xlane.xlu0 %617
  %v619 = vsel %vm510, %v584, 0.0
  %620 = vadd.xlane.f32.xlu0 %v619
  %v621 = vpop.xlane.xlu0 %620
  %v622 = vsel %vm510, %v586, 0.0
  %623 = vadd.xlane.f32.xlu0 %v622
  %v624 = vpop.xlane.xlu0 %623
  %v625 = vsel %vm510, %v588, 0.0
  %626 = vadd.xlane.f32.xlu0 %v625
  %v627 = vpop.xlane.xlu0 %626
  %v628 = vsel %vm510, %v590, 0.0
  %629 = vadd.xlane.f32.xlu0 %v628
  %v630 = vpop.xlane.xlu0 %629
  %v631 = vsel %vm510, %v592, 0.0
  %632 = vadd.xlane.f32.xlu0 %v631
  %v633 = vpop.xlane.xlu0 %632
  %v634 = vsel %vm510, %v594, 0.0
  %635 = vadd.xlane.f32.xlu0 %v634
  %v636 = vpop.xlane.xlu0 %635
  %v637 = vsel %vm510, %v596, 0.0
  %638 = vadd.xlane.f32.xlu0 %v637
  %v639 = vpop.xlane.xlu0 %638
  %v640 = vsel %vm510, %v598, 0.0
  %641 = vadd.xlane.f32.xlu0 %v640
  %v642 = vpop.xlane.xlu0 %641
  %v643 = vsel %vm510, %v600, 0.0
  %644 = vadd.xlane.f32.xlu0 %v643
  %v645 = vpop.xlane.xlu0 %644
  %v646 = vsel %vm510, %v602, 0.0
  %647 = vadd.xlane.f32.xlu0 %v646
  %v648 = vpop.xlane.xlu0 %647
  %v649 = vsel %vm510, %v604, 0.0
  %650 = vadd.xlane.f32.xlu0 %v649
  %v651 = vpop.xlane.xlu0 %650
  %v652 = vsel %vm510, %v606, 0.0
  %653 = vadd.xlane.f32.xlu0 %v652
  %v654 = vpop.xlane.xlu0 %653
  %v655 = vlog2.pop %v609
  %v656 = vmul.f32 %v655, 0.6931472
  %v657 = vlog2.pop %v612
  %v658 = vmul.f32 %v657, 0.6931472
  %v659 = vlog2.pop %v615
  %v660 = vmul.f32 %v659, 0.6931472
  %v661 = vlog2.pop %v618
  %v662 = vmul.f32 %v661, 0.6931472
  %v663 = vlog2.pop %v621
  %v664 = vmul.f32 %v663, 0.6931472
  %v665 = vlog2.pop %v624
  %v666 = vmul.f32 %v665, 0.6931472
  %v667 = vlog2.pop %v627
  %v668 = vmul.f32 %v667, 0.6931472
  %v669 = vlog2.pop %v630
  %v670 = vmul.f32 %v669, 0.6931472
  %v671 = vlog2.pop %v633
  %v672 = vmul.f32 %v671, 0.6931472
  %v673 = vlog2.pop %v636
  %v674 = vmul.f32 %v673, 0.6931472
  %v675 = vlog2.pop %v639
  %v676 = vmul.f32 %v675, 0.6931472
  %v677 = vlog2.pop %v642
  %v678 = vmul.f32 %v677, 0.6931472
  %v679 = vlog2.pop %v645
  %v680 = vmul.f32 %v679, 0.6931472
  %v681 = vlog2.pop %v648
  %v682 = vmul.f32 %v681, 0.6931472
  %v683 = vlog2.pop %v651
  %v684 = vmul.f32 %v683, 0.6931472
  %v685 = vlog2.pop %v654
  %v686 = vmul.f32 %v685, 0.6931472
  %v687 = vadd.f32 %v513, %v656
  %v688 = vadd.f32 %v516, %v658
  %v689 = vadd.f32 %v519, %v660
  %v690 = vadd.f32 %v522, %v662
  %v691 = vadd.f32 %v525, %v664
  %v692 = vadd.f32 %v528, %v666
  %v693 = vadd.f32 %v531, %v668
  %v694 = vadd.f32 %v534, %v670
  %v695 = vadd.f32 %v537, %v672
  %v696 = vadd.f32 %v540, %v674
  %v697 = vadd.f32 %v543, %v676
  %v698 = vadd.f32 %v546, %v678
  %v699 = vadd.f32 %v549, %v680
  %v700 = vadd.f32 %v552, %v682
  %v701 = vadd.f32 %v555, %v684
  %v702 = vadd.f32 %v558, %v686
  %v703 = vsub.f32 %v494, %v687
  %v704 = vsub.f32 %v495, %v688
  %v705 = vsub.f32 %v496, %v689
  %v706 = vsub.f32 %v497, %v690
  %v707 = vsub.f32 %v498, %v691
  %v708 = vsub.f32 %v499, %v692
  %v709 = vsub.f32 %v500, %v693
  %v710 = vsub.f32 %v501, %v694
  %v711 = vsub.f32 %v502, %v695
  %v712 = vsub.f32 %v503, %v696
  %v713 = vsub.f32 %v504, %v697
  %v714 = vsub.f32 %v505, %v698
  %v715 = vsub.f32 %v506, %v699
  %v716 = vsub.f32 %v507, %v700
  %v717 = vsub.f32 %v508, %v701
  %v718 = vsub.f32 %v509, %v702
  %v719 = vmul.f32 %v703, 1.442695
  %v720 = vpow.pop %v719
  %v721 = vmul.f32 %v704, 1.442695
  %v722 = vpow.pop %v721
  %v723 = vmul.f32 %v705, 1.442695
  %v724 = vpow.pop %v723
  %v725 = vmul.f32 %v706, 1.442695
  %v726 = vpow.pop %v725
  %v727 = vmul.f32 %v707, 1.442695
  %v728 = vpow.pop %v727
  %v729 = vmul.f32 %v708, 1.442695
  %v730 = vpow.pop %v729
  %v731 = vmul.f32 %v709, 1.442695
  %v732 = vpow.pop %v731
  %v733 = vmul.f32 %v710, 1.442695
  %v734 = vpow.pop %v733
  %v735 = vmul.f32 %v711, 1.442695
  %v736 = vpow.pop %v735
  %v737 = vmul.f32 %v712, 1.442695
  %v738 = vpow.pop %v737
  %v739 = vmul.f32 %v713, 1.442695
  %v740 = vpow.pop %v739
  %v741 = vmul.f32 %v714, 1.442695
  %v742 = vpow.pop %v741
  %v743 = vmul.f32 %v715, 1.442695
  %v744 = vpow.pop %v743
  %v745 = vmul.f32 %v716, 1.442695
  %v746 = vpow.pop %v745
  %v747 = vmul.f32 %v717, 1.442695
  %v748 = vpow.pop %v747
  %v749 = vmul.f32 %v718, 1.442695
  %v750 = vpow.pop %v749
  %v751 = vlaneseq
  %v752 = vand.u32 %v751, 127
  %753 = vset.pattern.permute.xlu0 0
  %754 = vperm.xlu0 %753, %v430
  %v755 = vpop.permute.xlu0 %754
  %756 = vset.pattern.permute.xlu0 0
  %757 = vperm.xlu0 %756, %v431
  %v758 = vpop.permute.xlu0 %757
  %759 = vset.pattern.permute.xlu0 0
  %760 = vperm.xlu0 %759, %v432
  %v761 = vpop.permute.xlu0 %760
  %762 = vset.pattern.permute.xlu0 0
  %763 = vperm.xlu0 %762, %v433
  %v764 = vpop.permute.xlu0 %763
  %765 = vset.pattern.permute.xlu0 0
  %766 = vperm.xlu0 %765, %v434
  %v767 = vpop.permute.xlu0 %766
  %768 = vset.pattern.permute.xlu0 0
  %769 = vperm.xlu0 %768, %v435
  %v770 = vpop.permute.xlu0 %769
  %771 = vset.pattern.permute.xlu0 0
  %772 = vperm.xlu0 %771, %v436
  %v773 = vpop.permute.xlu0 %772
  %774 = vset.pattern.permute.xlu0 0
  %775 = vperm.xlu0 %774, %v437
  %v776 = vpop.permute.xlu0 %775
  %777 = vset.pattern.permute.xlu0 0
  %778 = vperm.xlu0 %777, %v438
  %v779 = vpop.permute.xlu0 %778
  %780 = vset.pattern.permute.xlu0 0
  %781 = vperm.xlu0 %780, %v439
  %v782 = vpop.permute.xlu0 %781
  %783 = vset.pattern.permute.xlu0 0
  %784 = vperm.xlu0 %783, %v440
  %v785 = vpop.permute.xlu0 %784
  %786 = vset.pattern.permute.xlu0 0
  %787 = vperm.xlu0 %786, %v441
  %v788 = vpop.permute.xlu0 %787
  %789 = vset.pattern.permute.xlu0 0
  %790 = vperm.xlu0 %789, %v442
  %v791 = vpop.permute.xlu0 %790
  %792 = vset.pattern.permute.xlu0 0
  %793 = vperm.xlu0 %792, %v443
  %v794 = vpop.permute.xlu0 %793
  %795 = vset.pattern.permute.xlu0 0
  %796 = vperm.xlu0 %795, %v444
  %v797 = vpop.permute.xlu0 %796
  %798 = vset.pattern.permute.xlu0 0
  %799 = vperm.xlu0 %798, %v445
  %v800 = vpop.permute.xlu0 %799
  %vm801 = vcmp.eq.s32.totalorder %v752, %v755
  %vm802 = vcmp.eq.s32.totalorder %v752, %v758
  %vm803 = vcmp.eq.s32.totalorder %v752, %v761
  %vm804 = vcmp.eq.s32.totalorder %v752, %v764
  %vm805 = vcmp.eq.s32.totalorder %v752, %v767
  %vm806 = vcmp.eq.s32.totalorder %v752, %v770
  %vm807 = vcmp.eq.s32.totalorder %v752, %v773
  %vm808 = vcmp.eq.s32.totalorder %v752, %v776
  %vm809 = vcmp.eq.s32.totalorder %v752, %v779
  %vm810 = vcmp.eq.s32.totalorder %v752, %v782
  %vm811 = vcmp.eq.s32.totalorder %v752, %v785
  %vm812 = vcmp.eq.s32.totalorder %v752, %v788
  %vm813 = vcmp.eq.s32.totalorder %v752, %v791
  %vm814 = vcmp.eq.s32.totalorder %v752, %v794
  %vm815 = vcmp.eq.s32.totalorder %v752, %v797
  %vm816 = vcmp.eq.s32.totalorder %v752, %v800
  %v817 = vsel %vm801, 1, 0
  %v818 = vsel %vm802, 1, 0
  %v819 = vsel %vm803, 1, 0
  %v820 = vsel %vm804, 1, 0
  %v821 = vsel %vm805, 1, 0
  %v822 = vsel %vm806, 1, 0
  %v823 = vsel %vm807, 1, 0
  %v824 = vsel %vm808, 1, 0
  %v825 = vsel %vm809, 1, 0
  %v826 = vsel %vm810, 1, 0
  %v827 = vsel %vm811, 1, 0
  %v828 = vsel %vm812, 1, 0
  %v829 = vsel %vm813, 1, 0
  %v830 = vsel %vm814, 1, 0
  %v831 = vsel %vm815, 1, 0
  %v832 = vsel %vm816, 1, 0
  %v833 = vcvt.s32.f32 %v817
  %v834 = vcvt.s32.f32 %v818
  %v835 = vcvt.s32.f32 %v819
  %v836 = vcvt.s32.f32 %v820
  %v837 = vcvt.s32.f32 %v821
  %v838 = vcvt.s32.f32 %v822
  %v839 = vcvt.s32.f32 %v823
  %v840 = vcvt.s32.f32 %v824
  %v841 = vcvt.s32.f32 %v825
  %v842 = vcvt.s32.f32 %v826
  %v843 = vcvt.s32.f32 %v827
  %v844 = vcvt.s32.f32 %v828
  %v845 = vcvt.s32.f32 %v829
  %v846 = vcvt.s32.f32 %v830
  %v847 = vcvt.s32.f32 %v831
  %v848 = vcvt.s32.f32 %v832
  %v849 = vmul.f32 %v833, %v703
  %v850 = vmul.f32 %v834, %v704
  %v851 = vmul.f32 %v835, %v705
  %v852 = vmul.f32 %v836, %v706
  %v853 = vmul.f32 %v837, %v707
  %v854 = vmul.f32 %v838, %v708
  %v855 = vmul.f32 %v839, %v709
  %v856 = vmul.f32 %v840, %v710
  %v857 = vmul.f32 %v841, %v711
  %v858 = vmul.f32 %v842, %v712
  %v859 = vmul.f32 %v843, %v713
  %v860 = vmul.f32 %v844, %v714
  %v861 = vmul.f32 %v845, %v715
  %v862 = vmul.f32 %v846, %v716
  %v863 = vmul.f32 %v847, %v717
  %v864 = vmul.f32 %v848, %v718
  %v865 = vsel %vm510, %v849, 0.0
  %866 = vadd.xlane.f32.xlu0 %v865
  %v867 = vpop.xlane.xlu0 %866
  %v868 = vsel %vm510, %v850, 0.0
  %869 = vadd.xlane.f32.xlu0 %v868
  %v870 = vpop.xlane.xlu0 %869
  %v871 = vsel %vm510, %v851, 0.0
  %872 = vadd.xlane.f32.xlu0 %v871
  %v873 = vpop.xlane.xlu0 %872
  %v874 = vsel %vm510, %v852, 0.0
  %875 = vadd.xlane.f32.xlu0 %v874
  %v876 = vpop.xlane.xlu0 %875
  %v877 = vsel %vm510, %v853, 0.0
  %878 = vadd.xlane.f32.xlu0 %v877
  %v879 = vpop.xlane.xlu0 %878
  %v880 = vsel %vm510, %v854, 0.0
  %881 = vadd.xlane.f32.xlu0 %v880
  %v882 = vpop.xlane.xlu0 %881
  %v883 = vsel %vm510, %v855, 0.0
  %884 = vadd.xlane.f32.xlu0 %v883
  %v885 = vpop.xlane.xlu0 %884
  %v886 = vsel %vm510, %v856, 0.0
  %887 = vadd.xlane.f32.xlu0 %v886
  %v888 = vpop.xlane.xlu0 %887
  %v889 = vsel %vm510, %v857, 0.0
  %890 = vadd.xlane.f32.xlu0 %v889
  %v891 = vpop.xlane.xlu0 %890
  %v892 = vsel %vm510, %v858, 0.0
  %893 = vadd.xlane.f32.xlu0 %v892
  %v894 = vpop.xlane.xlu0 %893
  %v895 = vsel %vm510, %v859, 0.0
  %896 = vadd.xlane.f32.xlu0 %v895
  %v897 = vpop.xlane.xlu0 %896
  %v898 = vsel %vm510, %v860, 0.0
  %899 = vadd.xlane.f32.xlu0 %v898
  %v900 = vpop.xlane.xlu0 %899
  %v901 = vsel %vm510, %v861, 0.0
  %902 = vadd.xlane.f32.xlu0 %v901
  %v903 = vpop.xlane.xlu0 %902
  %v904 = vsel %vm510, %v862, 0.0
  %905 = vadd.xlane.f32.xlu0 %v904
  %v906 = vpop.xlane.xlu0 %905
  %v907 = vsel %vm510, %v863, 0.0
  %908 = vadd.xlane.f32.xlu0 %v907
  %v909 = vpop.xlane.xlu0 %908
  %v910 = vsel %vm510, %v864, 0.0
  %911 = vadd.xlane.f32.xlu0 %v910
  %v912 = vpop.xlane.xlu0 %911
  %v913 = vmul.f32 %v720, %v703
  %v914 = vmul.f32 %v722, %v704
  %v915 = vmul.f32 %v724, %v705
  %v916 = vmul.f32 %v726, %v706
  %v917 = vmul.f32 %v728, %v707
  %v918 = vmul.f32 %v730, %v708
  %v919 = vmul.f32 %v732, %v709
  %v920 = vmul.f32 %v734, %v710
  %v921 = vmul.f32 %v736, %v711
  %v922 = vmul.f32 %v738, %v712
  %v923 = vmul.f32 %v740, %v713
  %v924 = vmul.f32 %v742, %v714
  %v925 = vmul.f32 %v744, %v715
  %v926 = vmul.f32 %v746, %v716
  %v927 = vmul.f32 %v748, %v717
  %v928 = vmul.f32 %v750, %v718
  %v929 = vsel %vm478, %v913, 0.0
  %v930 = vsel %vm479, %v914, 0.0
  %v931 = vsel %vm480, %v915, 0.0
  %v932 = vsel %vm481, %v916, 0.0
  %v933 = vsel %vm482, %v917, 0.0
  %v934 = vsel %vm483, %v918, 0.0
  %v935 = vsel %vm484, %v919, 0.0
  %v936 = vsel %vm485, %v920, 0.0
  %v937 = vsel %vm486, %v921, 0.0
  %v938 = vsel %vm487, %v922, 0.0
  %v939 = vsel %vm488, %v923, 0.0
  %v940 = vsel %vm489, %v924, 0.0
  %v941 = vsel %vm490, %v925, 0.0
  %v942 = vsel %vm491, %v926, 0.0
  %v943 = vsel %vm492, %v927, 0.0
  %v944 = vsel %vm493, %v928, 0.0
  %v945 = vsel %vm510, %v929, 0.0
  %946 = vadd.xlane.f32.xlu0 %v945
  %v947 = vpop.xlane.xlu0 %946
  %v948 = vsel %vm510, %v930, 0.0
  %949 = vadd.xlane.f32.xlu0 %v948
  %v950 = vpop.xlane.xlu0 %949
  %v951 = vsel %vm510, %v931, 0.0
  %952 = vadd.xlane.f32.xlu0 %v951
  %v953 = vpop.xlane.xlu0 %952
  %v954 = vsel %vm510, %v932, 0.0
  %955 = vadd.xlane.f32.xlu0 %v954
  %v956 = vpop.xlane.xlu0 %955
  %v957 = vsel %vm510, %v933, 0.0
  %958 = vadd.xlane.f32.xlu0 %v957
  %v959 = vpop.xlane.xlu0 %958
  %v960 = vsel %vm510, %v934, 0.0
  %961 = vadd.xlane.f32.xlu0 %v960
  %v962 = vpop.xlane.xlu0 %961
  %v963 = vsel %vm510, %v935, 0.0
  %964 = vadd.xlane.f32.xlu0 %v963
  %v965 = vpop.xlane.xlu0 %964
  %v966 = vsel %vm510, %v936, 0.0
  %967 = vadd.xlane.f32.xlu0 %v966
  %v968 = vpop.xlane.xlu0 %967
  %v969 = vsel %vm510, %v937, 0.0
  %970 = vadd.xlane.f32.xlu0 %v969
  %v971 = vpop.xlane.xlu0 %970
  %v972 = vsel %vm510, %v938, 0.0
  %973 = vadd.xlane.f32.xlu0 %v972
  %v974 = vpop.xlane.xlu0 %973
  %v975 = vsel %vm510, %v939, 0.0
  %976 = vadd.xlane.f32.xlu0 %v975
  %v977 = vpop.xlane.xlu0 %976
  %v978 = vsel %vm510, %v940, 0.0
  %979 = vadd.xlane.f32.xlu0 %v978
  %v980 = vpop.xlane.xlu0 %979
  %v981 = vsel %vm510, %v941, 0.0
  %982 = vadd.xlane.f32.xlu0 %v981
  %v983 = vpop.xlane.xlu0 %982
  %v984 = vsel %vm510, %v942, 0.0
  %985 = vadd.xlane.f32.xlu0 %v984
  %v986 = vpop.xlane.xlu0 %985
  %v987 = vsel %vm510, %v943, 0.0
  %988 = vadd.xlane.f32.xlu0 %v987
  %v989 = vpop.xlane.xlu0 %988
  %v990 = vsel %vm510, %v944, 0.0
  %991 = vadd.xlane.f32.xlu0 %v990
  %v992 = vpop.xlane.xlu0 %991
  %v993 = vsub.f32 0.0, %v947
  %v994 = vsub.f32 0.0, %v950
  %v995 = vsub.f32 0.0, %v953
  %v996 = vsub.f32 0.0, %v956
  %v997 = vsub.f32 0.0, %v959
  %v998 = vsub.f32 0.0, %v962
  %v999 = vsub.f32 0.0, %v965
  %v1000 = vsub.f32 0.0, %v968
  %v1001 = vsub.f32 0.0, %v971
  %v1002 = vsub.f32 0.0, %v974
  %v1003 = vsub.f32 0.0, %v977
  %v1004 = vsub.f32 0.0, %v980
  %v1005 = vsub.f32 0.0, %v983
  %v1006 = vsub.f32 0.0, %v986
  %v1007 = vsub.f32 0.0, %v989
  %v1008 = vsub.f32 0.0, %v992
  %1009 = vst.msk [vmem:[%s7] sm:$0xff] %vm510, %v720
  %1010 = vst.msk [vmem:[%s7 + $0x8] sm:$0xff] %vm510, %v722
  %1011 = vst.msk [vmem:[%s7 + $0x10] sm:$0xff] %vm510, %v724
  %1012 = vst.msk [vmem:[%s7 + $0x18] sm:$0xff] %vm510, %v726
  %1013 = vst.msk [vmem:[%s7 + $0x20] sm:$0xff] %vm510, %v728
  %1014 = vst.msk [vmem:[%s7 + $0x28] sm:$0xff] %vm510, %v730
  %1015 = vst.msk [vmem:[%s7 + $0x30] sm:$0xff] %vm510, %v732
  %1016 = vst.msk [vmem:[%s7 + $0x38] sm:$0xff] %vm510, %v734
  %1017 = vst.msk [vmem:[%s7 + $0x40] sm:$0xff] %vm510, %v736
  %1018 = vst.msk [vmem:[%s7 + $0x48] sm:$0xff] %vm510, %v738
  %1019 = vst.msk [vmem:[%s7 + $0x50] sm:$0xff] %vm510, %v740
  %1020 = vst.msk [vmem:[%s7 + $0x58] sm:$0xff] %vm510, %v742
  %1021 = vst.msk [vmem:[%s7 + $0x60] sm:$0xff] %vm510, %v744
  %1022 = vst.msk [vmem:[%s7 + $0x68] sm:$0xff] %vm510, %v746
  %1023 = vst.msk [vmem:[%s7 + $0x70] sm:$0xff] %vm510, %v748
  %1024 = vst.msk [vmem:[%s7 + $0x78] sm:$0xff] %vm510, %v750
  %1041 = vrot.lane.b32.xlu0 %v336, 122
  %v1042 = vpop.permute.xlu0 %1041
  %1043 = vrot.lane.b32.xlu0 %v339, 122
  %v1044 = vpop.permute.xlu0 %1043
  %1045 = vrot.lane.b32.xlu0 %v344, 122
  %v1046 = vpop.permute.xlu0 %1045
  %1047 = vrot.lane.b32.xlu0 %v347, 122
  %v1048 = vpop.permute.xlu0 %1047
  %1049 = vrot.lane.b32.xlu0 %v352, 122
  %v1050 = vpop.permute.xlu0 %1049
  %1051 = vrot.lane.b32.xlu0 %v355, 122
  %v1052 = vpop.permute.xlu0 %1051
  %1053 = vrot.lane.b32.xlu0 %v360, 122
  %v1054 = vpop.permute.xlu0 %1053
  %1055 = vrot.lane.b32.xlu0 %v363, 122
  %v1056 = vpop.permute.xlu0 %1055
  %1057 = vrot.lane.b32.xlu0 %v368, 122
  %v1058 = vpop.permute.xlu0 %1057
  %1059 = vrot.lane.b32.xlu0 %v371, 122
  %v1060 = vpop.permute.xlu0 %1059
  %1061 = vrot.lane.b32.xlu0 %v376, 122
  %v1062 = vpop.permute.xlu0 %1061
  %1063 = vrot.lane.b32.xlu0 %v379, 122
  %v1064 = vpop.permute.xlu0 %1063
  %1065 = vrot.lane.b32.xlu0 %v384, 122
  %v1066 = vpop.permute.xlu0 %1065
  %1067 = vrot.lane.b32.xlu0 %v387, 122
  %v1068 = vpop.permute.xlu0 %1067
  %1069 = vrot.lane.b32.xlu0 %v392, 122
  %v1070 = vpop.permute.xlu0 %1069
  %1071 = vrot.lane.b32.xlu0 %v395, 122
  %v1072 = vpop.permute.xlu0 %1071
  %vm1089 = vcmask 7168
  %v1090 = vsel %vm1089, %v867, %v993
  %v1091 = vsel %vm1089, %v870, %v994
  %v1092 = vsel %vm1089, %v873, %v995
  %v1093 = vsel %vm1089, %v876, %v996
  %v1094 = vsel %vm1089, %v879, %v997
  %v1095 = vsel %vm1089, %v882, %v998
  %v1096 = vsel %vm1089, %v885, %v999
  %v1097 = vsel %vm1089, %v888, %v1000
  %v1098 = vsel %vm1089, %v891, %v1001
  %v1099 = vsel %vm1089, %v894, %v1002
  %v1100 = vsel %vm1089, %v897, %v1003
  %v1101 = vsel %vm1089, %v900, %v1004
  %v1102 = vsel %vm1089, %v903, %v1005
  %v1103 = vsel %vm1089, %v906, %v1006
  %v1104 = vsel %vm1089, %v909, %v1007
  %v1105 = vsel %vm1089, %v912, %v1008
  %vm1106 = vcmask 15360
  %v1107 = vsel %vm1106, %v1090, %v1042
  %v1108 = vsel %vm1106, %v1091, %v1044
  %v1109 = vsel %vm1106, %v1092, %v1046
  %v1110 = vsel %vm1106, %v1093, %v1048
  %v1111 = vsel %vm1106, %v1094, %v1050
  %v1112 = vsel %vm1106, %v1095, %v1052
  %v1113 = vsel %vm1106, %v1096, %v1054
  %v1114 = vsel %vm1106, %v1097, %v1056
  %v1115 = vsel %vm1106, %v1098, %v1058
  %v1116 = vsel %vm1106, %v1099, %v1060
  %v1117 = vsel %vm1106, %v1100, %v1062
  %v1118 = vsel %vm1106, %v1101, %v1064
  %v1119 = vsel %vm1106, %v1102, %v1066
  %v1120 = vsel %vm1106, %v1103, %v1068
  %v1121 = vsel %vm1106, %v1104, %v1070
  %v1122 = vsel %vm1106, %v1105, %v1072
  %1139 = vrot.lane.b32.xlu0 %v1107, 8
  %v1140 = vpop.permute.xlu0 %1139
  %1141 = vrot.lane.b32.xlu0 %v1108, 8
  %v1142 = vpop.permute.xlu0 %1141
  %1143 = vrot.lane.b32.xlu0 %v1109, 8
  %v1144 = vpop.permute.xlu0 %1143
  %1145 = vrot.lane.b32.xlu0 %v1110, 8
  %v1146 = vpop.permute.xlu0 %1145
  %1147 = vrot.lane.b32.xlu0 %v1111, 8
  %v1148 = vpop.permute.xlu0 %1147
  %1149 = vrot.lane.b32.xlu0 %v1112, 8
  %v1150 = vpop.permute.xlu0 %1149
  %1151 = vrot.lane.b32.xlu0 %v1113, 8
  %v1152 = vpop.permute.xlu0 %1151
  %1153 = vrot.lane.b32.xlu0 %v1114, 8
  %v1154 = vpop.permute.xlu0 %1153
  %1155 = vrot.lane.b32.xlu0 %v1115, 8
  %v1156 = vpop.permute.xlu0 %1155
  %1157 = vrot.lane.b32.xlu0 %v1116, 8
  %v1158 = vpop.permute.xlu0 %1157
  %1159 = vrot.lane.b32.xlu0 %v1117, 8
  %v1160 = vpop.permute.xlu0 %1159
  %1161 = vrot.lane.b32.xlu0 %v1118, 8
  %v1162 = vpop.permute.xlu0 %1161
  %1163 = vrot.lane.b32.xlu0 %v1119, 8
  %v1164 = vpop.permute.xlu0 %1163
  %1165 = vrot.lane.b32.xlu0 %v1120, 8
  %v1166 = vpop.permute.xlu0 %1165
  %1167 = vrot.lane.b32.xlu0 %v1121, 8
  %v1168 = vpop.permute.xlu0 %1167
  %1169 = vrot.lane.b32.xlu0 %v1122, 8
  %v1170 = vpop.permute.xlu0 %1169
  %vm1187 = vcmask 89152
  %1188 = vst.msk [vmem:[%s7] sm:$0xff] %vm1187, %v1140
  %1189 = vst.msk [vmem:[%s7 + $0x8] sm:$0xff] %vm1187, %v1142
  %1190 = vst.msk [vmem:[%s7 + $0x10] sm:$0xff] %vm1187, %v1144
  %1191 = vst.msk [vmem:[%s7 + $0x18] sm:$0xff] %vm1187, %v1146
  %1192 = vst.msk [vmem:[%s7 + $0x20] sm:$0xff] %vm1187, %v1148
  %1193 = vst.msk [vmem:[%s7 + $0x28] sm:$0xff] %vm1187, %v1150
  %1194 = vst.msk [vmem:[%s7 + $0x30] sm:$0xff] %vm1187, %v1152
  %1195 = vst.msk [vmem:[%s7 + $0x38] sm:$0xff] %vm1187, %v1154
  %1196 = vst.msk [vmem:[%s7 + $0x40] sm:$0xff] %vm1187, %v1156
  %1197 = vst.msk [vmem:[%s7 + $0x48] sm:$0xff] %vm1187, %v1158
  %1198 = vst.msk [vmem:[%s7 + $0x50] sm:$0xff] %vm1187, %v1160
  %1199 = vst.msk [vmem:[%s7 + $0x58] sm:$0xff] %vm1187, %v1162
  %1200 = vst.msk [vmem:[%s7 + $0x60] sm:$0xff] %vm1187, %v1164
  %1201 = vst.msk [vmem:[%s7 + $0x68] sm:$0xff] %vm1187, %v1166
  %1202 = vst.msk [vmem:[%s7 + $0x70] sm:$0xff] %vm1187, %v1168
  %1203 = vst.msk [vmem:[%s7 + $0x78] sm:$0xff] %vm1187, %v1170
  // Predicated region
  $region30: #{mcts_forward.1} parent=0 // pred_check
    _
  $region31: #{mcts_forward.1} parent=0 // pred_check_branch
    %1205 = sbr.rel (0) target = $region33
  $region32: #{mcts_forward.1} parent=0 // pred_region
    _
  $region33: #{mcts_forward.1} parent=0 // pred_fallthru
    _
  // Predicated region
  $region34: #{mcts_forward.1} parent=0 // pred_check
    _
  $region35: #{mcts_forward.1} parent=0 // pred_check_branch
    %1207 = sbr.rel (0) target = $region37
  $region36: #{mcts_forward.1} parent=0 // pred_region
    _
  $region37: #{mcts_forward.1} parent=0 // pred_fallthru
    _

</llo_original>
